<compile_context>
chip_gen: v7x
topology: tpu7x:2x2x1
jax: 0.10.0
libtpu: 0.0.40
codegen_flags: <defaults>
</compile_context>

<pallas_src>
import functools

import jax
import jax.numpy as jnp
from jax import lax
from jax.experimental import pallas as pl
from jax.experimental.pallas import tpu as pltpu

_NEG_BIG = -1e30  # finite "minus infinity" for masking (safe under exp/max)


def _ntxent_lse_kernel(q_ref, k_ref, lse_ref, m_sc, l_sc, *,
                       n_valid, mask_padding):
    """One (row-block i, col-block j) step of the online logsumexp.

    q_ref: (TM, D) rows, pre-normalised and pre-scaled by 1/temperature.
    k_ref: (TN, D) rows, pre-normalised.
    lse_ref: (TM, 1) per-row logsumexp over the full similarity row
             (main diagonal / padded columns excluded), written at the last
             column step.
    """
    i = pl.program_id(0)          # row-block index ("parallel")
    j = pl.program_id(1)          # col-block index (reduction, "arbitrary")
    nc = pl.num_programs(1)
    tm = q_ref.shape[0]
    tn = k_ref.shape[0]

    @pl.when(j == 0)
    def _init():
        m_sc[...] = jnp.full(m_sc.shape, _NEG_BIG, jnp.float32)
        l_sc[...] = jnp.zeros(l_sc.shape, jnp.float32)

    # Operands come pre-normalised / pre-scaled / pre-cast from the wrapper:
    # feed the MXU directly, accumulate in f32, no transpose (contract on D).
    s = lax.dot_general(q_ref[...], k_ref[...],
                        dimension_numbers=(((1,), (1,)), ((), ())),
                        preferred_element_type=jnp.float32)

    # Tile-local mask: main diagonal always; padded columns only when padding
    # actually exists (static skip otherwise).
    row_g = i * tm + lax.broadcasted_iota(jnp.int32, (tm, 1), 0)   # (TM, 1)
    col_g = j * tn + lax.broadcasted_iota(jnp.int32, (1, tn), 1)   # (1, TN)
    bad = row_g == col_g
    if mask_padding:
        bad = bad | (col_g >= n_valid)
    s = jnp.where(bad, jnp.float32(_NEG_BIG), s)

    # Online (flash-style) logsumexp over the column tiles.
    m_prev = m_sc[...]
    m_new = jnp.maximum(m_prev, jnp.max(s, axis=-1, keepdims=True))
    l_sc[...] = jnp.exp(m_prev - m_new) * l_sc[...] + jnp.sum(
        jnp.exp(s - m_new), axis=-1, keepdims=True)
    m_sc[...] = m_new

    @pl.when(j == nc - 1)
    def _finalize():
        lse_ref[...] = m_sc[...] + jnp.log(l_sc[...])


def _round_up(x, m):
    return (x + m - 1) // m * m


def _choose_tiles(n, d, itemsize):
    """Generation-aware (TM, TN, vmem_limit_bytes) selection."""
    try:
        vmem_cap = int(pltpu.get_tpu_info().vmem_capacity_bytes)
    except Exception:  # pragma: no cover - conservative fallback
        vmem_cap = 64 * 1024 * 1024
    big_vmem = vmem_cap >= 100 * 1024 * 1024          # v5e / v6e: 128 MiB
    vmem_limit = (64 if big_vmem else 32) * 1024 * 1024

    if n <= 16:
        t = _round_up(max(n, 8), 8)
        return t, t, vmem_limit

    tn = min(256, _round_up(n, 8))
    tm = min(512 if big_vmem else 256, _round_up(n, 8))

    # v7x: 2 TensorCores share the "parallel" row axis — make sure there are
    # at least 2 row blocks so neither core sits idle.  (Not forced on
    # v5e/v6e: a single row block there minimises K re-reads from HBM.)
    if not big_vmem and _round_up(n, tm) // tm < 2:
        tm = max(8, _round_up((n + 1) // 2, 8))

    # Budget: double-buffered (TM,D)+(TN,D) inputs plus ~4x (TM,TN) f32
    # similarity/exp temporaries, with headroom under the scoped limit.
    def fits(tm_, tn_):
        in_bytes = 2 * (tm_ + tn_) * d * itemsize
        tmp_bytes = 4 * tm_ * tn_ * 4
        return in_bytes + tmp_bytes < 0.7 * vmem_limit

    while not fits(tm, tn) and max(tm, tn) > 64:
        if tm >= tn:
            tm = max(64, _round_up(tm // 2, 8))
        else:
            tn = max(64, _round_up(tn // 2, 8))
    return tm, tn, vmem_limit


def ntxent_loss(zis, zjs, *, temperature=1.0, use_cosine_similarity=True,
                matmul_bf16=True, _tiles=None):
    """zis, zjs: (B, 1, D). Returns the scalar NT-Xent loss of the torch module."""
    b = int(zis.shape[0])
    half0 = jnp.squeeze(zjs, axis=1)          # torch order: reps = [zjs, zis]
    half1 = jnp.squeeze(zis, axis=1)
    n = 2 * b
    d = int(half0.shape[-1])

    reps = jnp.concatenate([half0, half1], axis=0).astype(jnp.float32)  # (N, D)
    if use_cosine_similarity:
        nrm = jnp.sqrt(jnp.sum(reps * reps, axis=-1, keepdims=True))
        reps = reps / jnp.maximum(nrm, 1e-8)   # O(N*D), done exactly once

    inv_t = jnp.float32(1.0 / float(temperature))
    q = reps * inv_t                            # fold 1/temperature into rows
    k = reps
    paired = jnp.concatenate([reps[b:], reps[:b]], axis=0)   # reps[(i+B) % N]
    pos = jnp.sum(q * paired, axis=-1)          # (N,) positive logits, f32

    mm_dtype = jnp.bfloat16 if matmul_bf16 else jnp.float32
    q = q.astype(mm_dtype)
    k = k.astype(mm_dtype)

    if _tiles is None:
        tm, tn, vmem_limit = _choose_tiles(n, d, jnp.dtype(mm_dtype).itemsize)
    else:                                       # test hook: force small tiles
        tm, tn = (_round_up(max(int(t), 8), 8) for t in _tiles)
        vmem_limit = 32 * 1024 * 1024

    n_pad_r = _round_up(n, tm)
    n_pad_c = _round_up(n, tn)
    if n_pad_r != n:
        q = jnp.pad(q, ((0, n_pad_r - n), (0, 0)))
    if n_pad_c != n:
        k = jnp.pad(k, ((0, n_pad_c - n), (0, 0)))
    nb_r = n_pad_r // tm
    nb_c = n_pad_c // tn

    kernel = functools.partial(_ntxent_lse_kernel, n_valid=n,
                               mask_padding=(n_pad_c != n))

    row_lse = pl.pallas_call(
        kernel,
        out_shape=jax.ShapeDtypeStruct((n_pad_r, 1), jnp.float32),
        grid_spec=pltpu.PrefetchScalarGridSpec(
            num_scalar_prefetch=0,
            grid=(nb_r, nb_c),
            in_specs=[
                pl.BlockSpec((tm, d), lambda i, j: (i, 0)),   # query rows
                pl.BlockSpec((tn, d), lambda i, j: (j, 0)),   # key rows
            ],
            out_specs=pl.BlockSpec((tm, 1), lambda i, j: (i, 0)),
            scratch_shapes=[pltpu.VMEM((tm, 1), jnp.float32),   # running max m
                            pltpu.VMEM((tm, 1), jnp.float32)],  # running sum l
        ),
        compiler_params=pltpu.CompilerParams(
            dimension_semantics=("parallel", "arbitrary"),
            vmem_limit_bytes=vmem_limit),
    )(q, k)

    # Tiny O(N) epilogue in plain JAX (padded rows are simply sliced away).
    return jnp.sum(row_lse[:n, 0] - pos) / jnp.float32(n)


def contrastive_disentanglement_loss(x1, x2, normalise=1):
    """Mirrors the PyTorch module: NTXentLoss(cosine, temperature=1)(x1, x2)."""
    del normalise  # unused in the original forward as well
    return ntxent_loss(x1, x2, temperature=1.0, use_cosine_similarity=True)


def _ntxent_reference(zis, zjs, *, temperature=1.0, use_cosine_similarity=True):
    """Pure-JAX reference reproducing the PyTorch forward exactly."""
    b = zis.shape[0]
    reps = jnp.concatenate(
        [jnp.squeeze(zjs, axis=1), jnp.squeeze(zis, axis=1)], axis=0)
    gram = jnp.einsum("id,jd->ij", reps, reps,
                      precision=lax.Precision.HIGHEST)
    if use_cosine_similarity:
        nrm = jnp.linalg.norm(reps, axis=-1, keepdims=True)
        sim = gram / jnp.maximum(nrm * nrm.T, 1e-8)
    else:
        sim = gram
    n = 2 * b
    l_pos = jnp.diagonal(sim, offset=b)
    r_pos = jnp.diagonal(sim, offset=-b)
    positives = jnp.concatenate([l_pos, r_pos]).reshape(n, 1)
    mask = ~(jnp.eye(n, dtype=bool) |
             jnp.eye(n, k=b, dtype=bool) |
             jnp.eye(n, k=-b, dtype=bool))
    negatives = sim[mask].reshape(n, n - 2)
    logits = jnp.concatenate([positives, negatives], axis=1) / temperature
    lse = jax.scipy.special.logsumexp(logits, axis=1)
    loss = jnp.sum(lse - logits[:, 0])
    return loss / n


if __name__ == "__main__":
    key = jax.random.PRNGKey(0)
    k1, k2, k3, k4 = jax.random.split(key, 4)

    # Case 1: module semantics (cosine, temperature=1), small batch.
    B, D = 2, 32
    x1 = jax.random.normal(k1, (B, 1, D), dtype=jnp.float32)
    x2 = jax.random.normal(k2, (B, 1, D), dtype=jnp.float32)
    ref = _ntxent_reference(x1, x2, temperature=1.0, use_cosine_similarity=True)

    # 1a: default path (bf16 MXU operands, f32 accumulation) — looser tolerance.
    loss_bf16 = jax.block_until_ready(contrastive_disentanglement_loss(x1, x2))
    assert jnp.allclose(loss_bf16, ref, atol=2e-2, rtol=2e-2), (loss_bf16, ref)

    # 1b: f32 MXU path — strict parity with the reference.
    loss_f32 = jax.block_until_ready(
        ntxent_loss(x1, x2, temperature=1.0, use_cosine_similarity=True,
                    matmul_bf16=False))
    assert jnp.allclose(loss_f32, ref, atol=1e-5, rtol=1e-5), (loss_f32, ref)

    # Case 2: force a 2x2 tile grid -> exercises the online logsumexp across
    # column tiles, row/column padding, the diagonal straddling blocks, and
    # the folded 1/temperature scale.
    B2, D2 = 5, 32
    a1 = jax.random.normal(k3, (B2, 1, D2), dtype=jnp.float32)
    a2 = jax.random.normal(k4, (B2, 1, D2), dtype=jnp.float32)
    loss2 = jax.block_until_ready(
        ntxent_loss(a1, a2, temperature=0.5, use_cosine_similarity=True,
                    matmul_bf16=False, _tiles=(8, 8)))
    ref2 = _ntxent_reference(a1, a2, temperature=0.5,
                             use_cosine_similarity=True)
    assert jnp.allclose(loss2, ref2, atol=1e-5, rtol=1e-5), (loss2, ref2)

    # Case 3: dot-product similarity branch of NTXentLoss.
    loss3 = jax.block_until_ready(
        ntxent_loss(a1, a2, temperature=1.0, use_cosine_similarity=False,
                    matmul_bf16=False, _tiles=(8, 8)))
    ref3 = _ntxent_reference(a1, a2, temperature=1.0,
                             use_cosine_similarity=False)
    assert jnp.allclose(loss3, ref3, atol=1e-4, rtol=1e-4), (loss3, ref3)

    print("KERNEL_OK")
</pallas_src>

<mosaic_0001>
module attributes {stable_mosaic.version = 11 : i64} {
  func.func @_ntxent_lse_kernel(%arg0: i32, %arg1: i32, %arg2: memref<8x32xbf16, #tpu.memory_space<vmem>>, %arg3: memref<8x32xbf16, #tpu.memory_space<vmem>>, %arg4: memref<8x1xf32, #tpu.memory_space<vmem>>, %arg5: memref<8x1xf32, #tpu.memory_space<vmem>>, %arg6: memref<8x1xf32, #tpu.memory_space<vmem>>) attributes {dimension_semantics = [#tpu.dimension_semantics<parallel>, #tpu.dimension_semantics<arbitrary>], iteration_bounds = array<i64: 1, 1>, scalar_prefetch = 0 : i64, scratch_operands = 2 : i64, tpu.core_type = #tpu.core_type<tc>, window_params = [{transform_indices = @transform_0, window_bounds = array<i64: 8, 32>}, {transform_indices = @transform_1, window_bounds = array<i64: 8, 32>}, {transform_indices = @transform_2, window_bounds = array<i64: 8, 1>}]} {
    %c0_i32 = arith.constant 0 : i32
    %0 = arith.cmpi eq, %arg1, %c0_i32 : i32
    %1 = arith.extui %0 : i1 to i32
    %c0_i32_0 = arith.constant 0 : i32
    %2 = arith.cmpi ne, %1, %c0_i32_0 : i32
    scf.if %2 {
      %cst_18 = arith.constant -1.000000e+30 : f32
      %42 = vector.broadcast %cst_18 : f32 to vector<8x1xf32>
      %c0_19 = arith.constant 0 : index
      %c0_20 = arith.constant 0 : index
      %43 = vector.load %arg5[%c0_19, %c0_20] : memref<8x1xf32, #tpu.memory_space<vmem>>, vector<8x1xf32>
      tpu.vector_store %arg5[%c0_19, %c0_20], %42 {strides = array<i32>} : memref<8x1xf32, #tpu.memory_space<vmem>>, vector<8x1xf32>,
      %cst_21 = arith.constant 0.000000e+00 : f32
      %44 = vector.broadcast %cst_21 : f32 to vector<8x1xf32>
      %c0_22 = arith.constant 0 : index
      %c0_23 = arith.constant 0 : index
      %45 = vector.load %arg6[%c0_22, %c0_23] : memref<8x1xf32, #tpu.memory_space<vmem>>, vector<8x1xf32>
      tpu.vector_store %arg6[%c0_22, %c0_23], %44 {strides = array<i32>} : memref<8x1xf32, #tpu.memory_space<vmem>>, vector<8x1xf32>,
    } else {
    }
    %c0 = arith.constant 0 : index
    %c0_1 = arith.constant 0 : index
    %3 = vector.load %arg2[%c0, %c0_1] : memref<8x32xbf16, #tpu.memory_space<vmem>>, vector<8x32xbf16>
    %c0_2 = arith.constant 0 : index
    %c0_3 = arith.constant 0 : index
    %4 = vector.load %arg3[%c0_2, %c0_3] : memref<8x32xbf16, #tpu.memory_space<vmem>>, vector<8x32xbf16>
    %cst = arith.constant dense<0.000000e+00> : vector<8x8xf32>
    %5 = tpu.matmul %3, %4, %cst {dimension_numbers = #tpu.dot_dimension_numbers<[1], [1], [0], [0], [0, 0, 1, 0], [], []>} : vector<8x32xbf16>, vector<8x32xbf16>, vector<8x8xf32> -> vector<8x8xf32>
    %c8_i32 = arith.constant 8 : i32
    %6 = arith.muli %arg0, %c8_i32 : i32
    %7 = tpu.iota {dimensions = array<i32: 0>} : vector<8x1xi32>
    %8 = vector.broadcast %6 : i32 to vector<8x1xi32>
    %9 = arith.addi %8, %7 : vector<8x1xi32>
    %c8_i32_4 = arith.constant 8 : i32
    %10 = arith.muli %arg1, %c8_i32_4 : i32
    %11 = tpu.iota {dimensions = array<i32: 1>} : vector<1x8xi32>
    %12 = vector.broadcast %10 : i32 to vector<1x8xi32>
    %13 = arith.addi %12, %11 : vector<1x8xi32>
    %14 = vector.broadcast %9 : vector<8x1xi32> to vector<8x8xi32>
    %15 = vector.broadcast %13 : vector<1x8xi32> to vector<8x8xi32>
    %16 = arith.cmpi eq, %14, %15 : vector<8x8xi32>
    %c4_i32 = arith.constant 4 : i32
    %17 = vector.broadcast %c4_i32 : i32 to vector<1x8xi32>
    %18 = arith.cmpi sge, %13, %17 : vector<1x8xi32>
    %19 = vector.broadcast %18 : vector<1x8xi1> to vector<8x8xi1>
    %20 = arith.ori %16, %19 : vector<8x8xi1>
    %cst_5 = arith.constant -1.000000e+30 : f32
    %21 = vector.broadcast %cst_5 : f32 to vector<8x8xf32>
    %22 = arith.select %20, %21, %5 : vector<8x8xi1>, vector<8x8xf32>
    %c0_6 = arith.constant 0 : index
    %c0_7 = arith.constant 0 : index
    %23 = vector.load %arg5[%c0_6, %c0_7] : memref<8x1xf32, #tpu.memory_space<vmem>>, vector<8x1xf32>
    %cst_8 = arith.constant dense<0xFF800000> : vector<8xf32>
    %24 = vector.multi_reduction <maximumf>, %22, %cst_8 [1] : vector<8x8xf32> to vector<8xf32>
    %25 = vector.shape_cast %24 : vector<8xf32> to vector<8x1xf32>
    %26 = arith.maximumf %23, %25 : vector<8x1xf32>
    %27 = arith.subf %23, %26 : vector<8x1xf32>
    %28 = math.exp %27 : vector<8x1xf32>
    %c0_9 = arith.constant 0 : index
    %c0_10 = arith.constant 0 : index
    %29 = vector.load %arg6[%c0_9, %c0_10] : memref<8x1xf32, #tpu.memory_space<vmem>>, vector<8x1xf32>
    %30 = arith.mulf %28, %29 : vector<8x1xf32>
    %31 = vector.broadcast %26 : vector<8x1xf32> to vector<8x8xf32>
    %32 = arith.subf %22, %31 : vector<8x8xf32>
    %33 = math.exp %32 : vector<8x8xf32>
    %cst_11 = arith.constant dense<0.000000e+00> : vector<8xf32>
    %34 = vector.multi_reduction <add>, %33, %cst_11 [1] : vector<8x8xf32> to vector<8xf32>
    %35 = vector.shape_cast %34 : vector<8xf32> to vector<8x1xf32>
    %36 = arith.addf %30, %35 : vector<8x1xf32>
    %c0_12 = arith.constant 0 : index
    %c0_13 = arith.constant 0 : index
    %37 = vector.load %arg6[%c0_12, %c0_13] : memref<8x1xf32, #tpu.memory_space<vmem>>, vector<8x1xf32>
    tpu.vector_store %arg6[%c0_12, %c0_13], %36 {strides = array<i32>} : memref<8x1xf32, #tpu.memory_space<vmem>>, vector<8x1xf32>,
    %c0_14 = arith.constant 0 : index
    %c0_15 = arith.constant 0 : index
    %38 = vector.load %arg5[%c0_14, %c0_15] : memref<8x1xf32, #tpu.memory_space<vmem>>, vector<8x1xf32>
    tpu.vector_store %arg5[%c0_14, %c0_15], %26 {strides = array<i32>} : memref<8x1xf32, #tpu.memory_space<vmem>>, vector<8x1xf32>,
    %c0_i32_16 = arith.constant 0 : i32
    %39 = arith.cmpi eq, %arg1, %c0_i32_16 : i32
    %40 = arith.extui %39 : i1 to i32
    %c0_i32_17 = arith.constant 0 : i32
    %41 = arith.cmpi ne, %40, %c0_i32_17 : i32
    scf.if %41 {
      %c0_18 = arith.constant 0 : index
      %c0_19 = arith.constant 0 : index
      %42 = vector.load %arg5[%c0_18, %c0_19] : memref<8x1xf32, #tpu.memory_space<vmem>>, vector<8x1xf32>
      %c0_20 = arith.constant 0 : index
      %c0_21 = arith.constant 0 : index
      %43 = vector.load %arg6[%c0_20, %c0_21] : memref<8x1xf32, #tpu.memory_space<vmem>>, vector<8x1xf32>
      %44 = math.log %43 : vector<8x1xf32>
      %45 = arith.addf %42, %44 : vector<8x1xf32>
      %c0_22 = arith.constant 0 : index
      %c0_23 = arith.constant 0 : index
      %46 = vector.load %arg4[%c0_22, %c0_23] : memref<8x1xf32, #tpu.memory_space<vmem>>, vector<8x1xf32>
      tpu.vector_store %arg4[%c0_22, %c0_23], %45 {strides = array<i32>} : memref<8x1xf32, #tpu.memory_space<vmem>>, vector<8x1xf32>,
    } else {
    }
    return
  }
  func.func @transform_0(%arg0: i32, %arg1: i32) -> (i32, i32) {
    %c0_i32 = arith.constant 0 : i32
    %c0_i32_0 = arith.constant 0 : i32
    return %arg0, %c0_i32 : i32, i32
  }
  func.func @transform_1(%arg0: i32, %arg1: i32) -> (i32, i32) {
    %c0_i32 = arith.constant 0 : i32
    %c0_i32_0 = arith.constant 0 : i32
    return %arg1, %c0_i32 : i32, i32
  }
  func.func @transform_2(%arg0: i32, %arg1: i32) -> (i32, i32) {
    %c0_i32 = arith.constant 0 : i32
    %c0_i32_0 = arith.constant 0 : i32
    return %arg0, %c0_i32 : i32, i32
  }
}

</mosaic_0001>

<llo_original>
// kernel: tpu_custom_call.1
$region0: #{tpu_custom_call.1}
  #allocation0 [shape = 'u32[]', space=smem, size = 0x4, offset = 0x4, fixed_abs, tag = 'smem constant byte address 0x4 - core index']
  #allocation1 [shape = 'u32[144,128]{1,0:T(1,128)}', space=vmem, size = 0x12000, scoped, tag = 'internal scratch']
  #allocation2 [shape = 'f32[8,1]{1,0:T(8,128)}', space=vmem, size = 0x1000, scoped, tag = 'scratch operand']
  #allocation3 [shape = 'f32[8,1]{1,0:T(8,128)}', space=vmem, size = 0x1000, scoped, tag = 'scratch operand']
  %s0 = inlined_call_operand.hbm [shape: bf16[8,32], index: 0, kind: input, shape index: {}]
  %s1 = inlined_call_operand.hbm [shape: bf16[8,32], index: 1, kind: input, shape index: {}]
  %s2 = inlined_call_operand.vmem [shape: f32[8,1], index: 2, kind: output, shape index: {}]
  %s3 = sld [smem:[#allocation0]]
  $region34: #{tpu_custom_call.1} parent=0
    _
  %s5 = ssub.s32 1, %s3
  %s6 = scalar_select 0, %s5, %s3
  $region1: #{tpu_custom_call.1} parent=0
    #allocation4 [shape = 'u8[2048]{0}', space=vmem, size = 0x800, scoped, tag = 'input window, operand 0, single buffered']
    #allocation5 [shape = 's32[1]{0}', space=sflag, size = 0x4, scoped, tag = 'scoped memory for tpu_custom_call.1']
    #allocation6 [shape = 'u8[2048]{0}', space=vmem, size = 0x800, scoped, tag = 'input window, operand 1, single buffered']
    #allocation7 [shape = 's32[1]{0}', space=sflag, size = 0x4, scoped, tag = 'scoped memory for tpu_custom_call.1']
    %7 = vsyncpa [#allocation5], 0
    %8 = vsyncpa [#allocation7], 0
    // Predicated region
    $region2: #{tpu_custom_call.1} parent=1 // pred_check
      _
    $region3: #{tpu_custom_call.1} parent=1 // pred_check_branch
      %10 = sbr.rel (0) target = $region5
    $region4: #{tpu_custom_call.1} parent=1 // pred_region
      %s12 = ssub.s32 64, 64
      %13 = vsyncadd [#allocation5], %s12
      %s15 = sshll.u32 [#allocation4], 4
      %s16 = int_to_ptr.vmem [resolvable:$true] %s15
      %18 = dma.hbm_to_vmem [thread:$0]  %s0, 64, %s16, [#allocation5]
    $region5: #{tpu_custom_call.1} parent=1 // pred_fallthru
      _
    // Predicated region
    $region6: #{tpu_custom_call.1} parent=1 // pred_check
      _
    $region7: #{tpu_custom_call.1} parent=1 // pred_check_branch
      %20 = sbr.rel (0) target = $region9
    $region8: #{tpu_custom_call.1} parent=1 // pred_region
      %s22 = ssub.s32 64, 64
      %23 = vsyncadd [#allocation7], %s22
      %s25 = sshll.u32 [#allocation6], 4
      %s26 = int_to_ptr.vmem [resolvable:$true] %s25
      %28 = dma.hbm_to_vmem [thread:$0]  %s1, 64, %s26, [#allocation7]
    $region9: #{tpu_custom_call.1} parent=1 // pred_fallthru
      _
    // Predicated region
    $region10: #{tpu_custom_call.1} parent=1 // pred_check
      _
    $region11: #{tpu_custom_call.1} parent=1 // pred_check_branch
      %30 = sbr.rel (0) target = $region13
    $region12: #{tpu_custom_call.1} parent=1 // pred_region
      %31 = dma.done [#allocation5], 64
    $region13: #{tpu_custom_call.1} parent=1 // pred_fallthru
      _
    // Predicated region
    $region14: #{tpu_custom_call.1} parent=1 // pred_check
      _
    $region15: #{tpu_custom_call.1} parent=1 // pred_check_branch
      %33 = sbr.rel (0) target = $region17
    $region16: #{tpu_custom_call.1} parent=1 // pred_region
      %34 = dma.done [#allocation7], 64
    $region17: #{tpu_custom_call.1} parent=1 // pred_fallthru
      _
    %p36 = scmp.eq.s32.totalorder 0, 0
    // Predicated region
    $region18: #{tpu_custom_call.1} parent=1 // pred_check
      %p37 = pneg %p36
    $region19: #{tpu_custom_call.1} parent=1 // pred_check_branch
      %39 = sbr.rel (%p37) target = $region21
    $region20: #{tpu_custom_call.1} parent=1 // pred_region
      %vm40 = vcmask 7168
      %41 = vst.msk [vmem:[#allocation2] sm:$0xff] %vm40, -1e+30
      %42 = vst.msk [vmem:[#allocation3] sm:$0xff] %vm40, 0.0
    $region21: #{tpu_custom_call.1} parent=1 // pred_fallthru
      _
    %v43 = vld [vmem:[#allocation4] sm:$0xf]
    %v44 = vld [vmem:[#allocation6] sm:$0xf]
    %vm45 = vcmask 261120
    %v47 = vsel %vm45, %v43, 0
    %v50 = vsel %vm45, %v44, 0
    %52 = vmatprep.subr.bf16.mxu0 0
    %53 = vmatpush1.bf16.xpose.msra.mxu0 %v50
    %54 = vmatprep.subr.bf16.mxu0 0
    %55 = vmatpush1.bf16.xpose.msra.mxu0 0
    %56 = vmatprep.subr.bf16.mxu0 0
    %57 = vmatpush1.bf16.xpose.msra.mxu0 0
    %58 = vmatprep.subr.bf16.mxu0 0
    %59 = vmatpush1.bf16.xpose.msra.mxu0 0
    %60 = vmatprep.subr.bf16.mxu0 0
    %61 = vmatpush1.bf16.xpose.msra.mxu0 0
    %62 = vmatprep.subr.bf16.mxu0 0
    %63 = vmatpush1.bf16.xpose.msra.mxu0 0
    %64 = vmatprep.subr.bf16.mxu0 0
    %65 = vmatpush1.bf16.xpose.msra.mxu0 0
    %66 = vmatprep.subr.bf16.mxu0 0
    %67 = vmatpush1.bf16.xpose.msra.mxu0 0
    %68 = vmatprep.subr.bf16.mxu0 0
    %69 = vmatpush1.bf16.xpose.msra.mxu0 0
    %70 = vmatprep.subr.bf16.mxu0 0
    %71 = vmatpush1.bf16.xpose.msra.mxu0 0
    %72 = vmatprep.subr.bf16.mxu0 0
    %73 = vmatpush1.bf16.xpose.msra.mxu0 0
    %74 = vmatprep.subr.bf16.mxu0 0
    %75 = vmatpush1.bf16.xpose.msra.mxu0 0
    %76 = vmatprep.subr.bf16.mxu0 0
    %77 = vmatpush1.bf16.xpose.msra.mxu0 0
    %78 = vmatprep.subr.bf16.mxu0 0
    %79 = vmatpush1.bf16.xpose.msra.mxu0 0
    %80 = vmatprep.subr.bf16.mxu0 0
    %81 = vmatpush1.bf16.xpose.msra.mxu0 0
    %82 = vmatprep.subr.bf16.mxu0 0
    %83 = vmatpush1.bf16.xpose.msra.mxu0 0
    %84 = vmatprep.mubr.bf16.mxu0 0
    %85 = vmatmul.mubr.bf16.gmra.mrb[0].mxu0 %v47
    %v86 = vpop.f32.mrb[0].mxu0
    %v87 = vadd.f32 0.0, %v86
    %v88 = vpop.f32.mrb[0].mxu0
    %v89 = vpop.f32.mrb[0].mxu0
    %v90 = vpop.f32.mrb[0].mxu0
    %91 = vdwg.mxu0
    %s92 = smul.u32 0, 8
    %v93 = vlaneseq
    %v94 = vshrl.u32 %v93, 7
    %v95 = vstv %s92
    %v96 = vadd.s32 %v95, %v94
    %s97 = smul.u32 0, 8
    %v98 = vlaneseq
    %v99 = vand.u32 %v98, 127
    %v100 = vstv %s97
    %v101 = vadd.s32 %v100, %v99
    %vm102 = vcmp.eq.s32.totalorder %v96, %v101
    %vm103 = vcmp.ge.s32.totalorder %v101, 4
    %v104 = vsel %vm103, 1, 0
    %vm105 = vcmp.eq.s32.totalorder %v104, 1
    %vm106 = vmor %vm102, %vm105
    %v107 = vsel %vm106, -1e+30, %v87
    %v108 = vld [vmem:[#allocation2] sm:$0xff]
    %vm109 = vcmask 64512
    %v110 = vsel %vm109, %v107, -inf
    %111 = vmax.xlane.f32.xlu0 %v110
    %v112 = vpop.xlane.xlu0 %111
    %v113 = vmax.f32 %v108, %v112
    %v114 = vsub.f32 %v108, %v113
    %v115 = vmul.f32 %v114, 1.442695
    %v116 = vpow.pop %v115
    %v117 = vld [vmem:[#allocation3] sm:$0xff]
    %v118 = vmul.f32 %v116, %v117
    %120 = vset.pattern.permute.xlu0 0
    %121 = vperm.xlu0 %120, %v113
    %v122 = vpop.permute.xlu0 %121
    %v124 = vsub.f32 %v107, %v122
    %v125 = vmul.f32 %v124, 1.442695
    %v126 = vpow.pop %v125
    %v127 = vsel %vm109, %v126, 0.0
    %128 = vadd.xlane.f32.xlu0 %v127
    %v129 = vpop.xlane.xlu0 %128
    %v130 = vadd.f32 %v118, %v129
    %vm131 = vcmask 7168
    %132 = vst.msk [vmem:[#allocation3] sm:$0xff] %vm131, %v130
    %133 = vst.msk [vmem:[#allocation2] sm:$0xff] %vm131, %v113
    // Predicated region
    $region22: #{tpu_custom_call.1} parent=1 // pred_check
      %p134 = pneg %p36
    $region23: #{tpu_custom_call.1} parent=1 // pred_check_branch
      %136 = sbr.rel (%p134) target = $region25
    $region24: #{tpu_custom_call.1} parent=1 // pred_region
      %v137 = vld [vmem:[#allocation2] sm:$0xff]
      %v138 = vld [vmem:[#allocation3] sm:$0xff]
      %v139 = vlog2.pop %v138
      %v140 = vmul.f32 %v139, 0.6931472
      %v141 = vadd.f32 %v137, %v140
      %142 = vst.msk [vmem:[%s2] sm:$0xff] %vm131, %v141
    $region25: #{tpu_custom_call.1} parent=1 // pred_fallthru
      _
    // Predicated region
    $region26: #{tpu_custom_call.1} parent=1 // pred_check
      _
    $region27: #{tpu_custom_call.1} parent=1 // pred_check_branch
      %144 = sbr.rel (0) target = $region29
    $region28: #{tpu_custom_call.1} parent=1 // pred_region
      _
    $region29: #{tpu_custom_call.1} parent=1 // pred_fallthru
      _
    // Predicated region
    $region30: #{tpu_custom_call.1} parent=1 // pred_check
      _
    $region31: #{tpu_custom_call.1} parent=1 // pred_check_branch
      %146 = sbr.rel (0) target = $region33
    $region32: #{tpu_custom_call.1} parent=1 // pred_region
      _
    $region33: #{tpu_custom_call.1} parent=1 // pred_fallthru
      _
    %147 = vsyncpa [#allocation5], 1
    %148 = vsyncpa [#allocation7], 1

</llo_original>
